<compile_context>
chip_gen: v7x
topology: tpu7x:2x2x1
jax: 0.10.0
libtpu: 0.0.40
codegen_flags: <defaults>
</compile_context>

<pallas_src>
import functools

import jax
import jax.numpy as jnp
import numpy as np
from jax import lax
from jax.experimental import pallas as pl
from jax.experimental.pallas import tpu as pltpu

EPS = 1e-5  # PyTorch BatchNorm default


def _round_up(x, m):
    return ((x + m - 1) // m) * m


# ----------------------------------------------------------------------------- kernel
def dae_kernel(img_ref, wv_ref, b1_ref, wh_ref, bh_ref, wr_ref, br_ref,
               out_ref, acc_ref, *, num_layers):
    s = pl.program_id(1)

    @pl.when(s == 0)
    def _init():
        acc_ref[...] = jnp.zeros_like(acc_ref)

    # Chunked global-average pool: accumulate spatial partial sums per batch tile.
    # The 1/(H*W) scale and BN1 are folded into wv/b1 host-side.  The image streams
    # in bf16; upconvert before the sum (v5e has no bf16 VPU) and accumulate in f32.
    acc_ref[...] += jnp.sum(img_ref[...].astype(jnp.float32), axis=-1)

    @pl.when(s == pl.num_programs(1) - 1)
    def _finalize():
        # vision stand-in head + folded BatchNorm1 + ReLU (dropout = identity, eval).
        # Activations cast to bf16 for the MXU; accumulation stays f32.
        x = jnp.dot(acc_ref[...].astype(jnp.bfloat16), wv_ref[...],
                    preferred_element_type=jnp.float32) + b1_ref[...]
        x = jnp.maximum(x, 0.0)

        # shared hidden block, repeated (num_layers - 1) times
        def body(_, h):
            h = jnp.dot(h.astype(jnp.bfloat16), wh_ref[...],
                        preferred_element_type=jnp.float32) + bh_ref[...]
            return jnp.maximum(h, 0.0)

        x = lax.fori_loop(0, num_layers - 1, body, x, unroll=True)

        # regressor: Linear + folded BatchNorm1d
        y = jnp.dot(x.astype(jnp.bfloat16), wr_ref[...],
                    preferred_element_type=jnp.float32) + br_ref[...]
        out_ref[...] = y


# ----------------------------------------------------------------------------- params
def make_params(key, channels, num_nodes, num_semantics):
    """Raw (PyTorch-style, un-folded) parameters used by both kernel and reference."""
    ks = jax.random.split(key, 10)
    p = {
        # vision stand-in: Linear(channels -> num_nodes), weight stored (in, out)
        "wv": 0.1 * jax.random.normal(ks[0], (channels, num_nodes), jnp.float32),
        "bv": 0.01 * jax.random.normal(ks[1], (num_nodes,), jnp.float32),
        # batchnorm1
        "bn1g": 1.0 + 0.1 * jax.random.normal(ks[2], (num_nodes,), jnp.float32),
        "bn1b": 0.1 * jax.random.normal(ks[3], (num_nodes,), jnp.float32),
        "bn1m": 0.05 * jax.random.normal(ks[4], (num_nodes,), jnp.float32),
        "bn1v": 1.0 + 0.1 * jnp.abs(jax.random.normal(ks[5], (num_nodes,), jnp.float32)),
        # shared hidden block: Linear(num_nodes -> num_nodes) + BN
        "wh": 0.1 * jax.random.normal(ks[6], (num_nodes, num_nodes), jnp.float32),
        "bh": 0.01 * jax.random.normal(ks[7], (num_nodes,), jnp.float32),
        "bnhg": jnp.linspace(0.9, 1.1, num_nodes, dtype=jnp.float32),
        "bnhb": jnp.linspace(-0.05, 0.05, num_nodes, dtype=jnp.float32),
        "bnhm": jnp.linspace(-0.02, 0.02, num_nodes, dtype=jnp.float32),
        "bnhv": jnp.linspace(0.8, 1.2, num_nodes, dtype=jnp.float32),
        # regressor: Linear(num_nodes -> num_semantics) + BN(num_semantics)
        "wr": 0.1 * jax.random.normal(ks[8], (num_nodes, num_semantics), jnp.float32),
        "br": 0.01 * jax.random.normal(ks[9], (num_semantics,), jnp.float32),
        "bnrg": jnp.linspace(0.95, 1.05, num_semantics, dtype=jnp.float32),
        "bnrb": jnp.linspace(-0.1, 0.1, num_semantics, dtype=jnp.float32),
        "bnrm": jnp.linspace(-0.03, 0.03, num_semantics, dtype=jnp.float32),
        "bnrv": jnp.linspace(0.9, 1.1, num_semantics, dtype=jnp.float32),
    }
    return p


def fold_and_pad_params(params, channels, num_nodes, num_semantics, hw):
    """Fold eval BatchNorm + mean scale into Linear weights; pad to 128 lanes.

    Weights are stored bf16 (MXU-native, halves weight VMEM/DMA); biases stay f32.
    Padded rows/columns are exact zeros, so padded lanes stay 0 through the network.
    """
    nodes_p = _round_up(num_nodes, 128)
    sem_p = _round_up(num_semantics, 128)

    def scale(g, v):
        return g * jax.lax.rsqrt(v + EPS)

    s1 = scale(params["bn1g"], params["bn1v"])
    wv_f = params["wv"] * s1[None, :] / float(hw)          # 1/HW folded in
    b1_f = (params["bv"] - params["bn1m"]) * s1 + params["bn1b"]

    sh = scale(params["bnhg"], params["bnhv"])
    wh_f = params["wh"] * sh[None, :]
    bh_f = (params["bh"] - params["bnhm"]) * sh + params["bnhb"]

    sr = scale(params["bnrg"], params["bnrv"])
    wr_f = params["wr"] * sr[None, :]
    br_f = (params["br"] - params["bnrm"]) * sr + params["bnrb"]

    def pad2(w, r, c):
        return jnp.pad(w, ((0, r - w.shape[0]), (0, c - w.shape[1]))).astype(jnp.bfloat16)

    def padrow(b, c):
        return jnp.pad(b.reshape(1, -1), ((0, 0), (0, c - b.shape[0]))).astype(jnp.float32)

    folded = dict(
        wv=pad2(wv_f, channels, nodes_p),
        b1=padrow(b1_f, nodes_p),
        wh=pad2(wh_f, nodes_p, nodes_p),
        bh=padrow(bh_f, nodes_p),
        wr=pad2(wr_f, nodes_p, sem_p),
        br=padrow(br_f, sem_p),
    )
    return folded, nodes_p, sem_p


# ----------------------------------------------------------------------------- wrapper
def dae_forward(images, params, num_layers, num_nodes, num_semantics):
    """images: (N, C, H, W) float32 (PyTorch NCHW). Returns (N, num_semantics)."""
    n, c, h, w = images.shape
    hw = h * w

    folded, nodes_p, sem_p = fold_and_pad_params(params, c, num_nodes,
                                                 num_semantics, hw)

    # ---- chip-aware VMEM budget ------------------------------------------------
    try:
        vmem_cap = int(pltpu.get_tpu_info().vmem_capacity_bytes)
    except Exception:
        vmem_cap = 64 * 1024 * 1024          # conservative (v7x per-TC) fallback
    big_vmem = vmem_cap >= (100 << 20)       # v5e / v6e: 128 MiB; v7x: 64 MiB
    vmem_limit = (100 << 20) if big_vmem else (52 << 20)
    per_block_cap = (24 << 20) if big_vmem else (10 << 20)

    # ---- batch tiling: >=2 tiles when possible so both v7x TensorCores get work
    tb = min(128, max(8, _round_up(-(-n // 2), 8)))
    # bf16 image blocks: C sits on (packed) sublanes -> pads to a multiple of 16.
    c_sub = _round_up(max(c, 1), 16)
    # Shrink the batch tile if even the minimal (ts=128) chunk would bust the budget
    # (realistic backbone channel counts: C = 1280 / 2048 / ...).
    tb = min(tb, max(8, (per_block_cap // (c_sub * 128 * 2)) // 8 * 8))
    n_pad = _round_up(n, tb)
    nb = n_pad // tb

    # ---- resident VMEM: single-buffered bf16 weights, f32 biases, output, scratch
    w_bytes = 2 * (c_sub * nodes_p
                   + _round_up(nodes_p, 16) * nodes_p
                   + _round_up(nodes_p, 16) * sem_p)
    b_bytes = 4 * 8 * (2 * nodes_p + sem_p)                 # (1,X) biases pad to 8 rows
    misc = 2 * tb * sem_p * 4 + tb * _round_up(c, 8) * 4 + (4 << 20)  # out, acc, headroom

    # ---- image chunk sizing (3 buffers: triple-buffered stream) -----------------
    n_img_bufs = 3
    img_budget = max(1 << 20, vmem_limit - w_bytes - b_bytes - misc)
    per_block = min(per_block_cap, img_budget // n_img_bufs)

    hw128 = _round_up(hw, 128)
    bytes_per_lane_col = tb * c_sub * 2                     # bf16 stream
    max_ts = max(128, (per_block // bytes_per_lane_col) // 128 * 128)
    ts = min(hw128, max_ts)
    hw_pad = _round_up(hw, ts)
    ns = hw_pad // ts

    # zero-pad; padded batch rows / spatial positions do not perturb the pooled sums
    img = images.reshape(n, c, hw).astype(jnp.bfloat16)
    img = jnp.pad(img, ((0, n_pad - n), (0, 0), (0, hw_pad - hw)))

    const = lambda b, s: (0, 0)

    def run(use_pipeline_mode):
        if use_pipeline_mode:
            img_spec = pl.BlockSpec((tb, c, ts), lambda b, s: (b, 0, s),
                                    pipeline_mode=pl.Buffered(3))
            wspec = lambda shape: pl.BlockSpec(shape, const,
                                               pipeline_mode=pl.Buffered(1))
        else:
            img_spec = pl.BlockSpec((tb, c, ts), lambda b, s: (b, 0, s))
            wspec = lambda shape: pl.BlockSpec(shape, const)

        grid_spec = pltpu.PrefetchScalarGridSpec(
            num_scalar_prefetch=0,
            grid=(nb, ns),
            in_specs=[
                img_spec,                      # streamed image chunks
                wspec((c, nodes_p)),           # folded vision-head weight (bf16)
                wspec((1, nodes_p)),           # folded bias 1 (f32)
                wspec((nodes_p, nodes_p)),     # shared hidden weight (bf16)
                wspec((1, nodes_p)),           # shared hidden bias (f32)
                wspec((nodes_p, sem_p)),       # regressor weight (bf16)
                wspec((1, sem_p)),             # regressor bias (f32)
            ],
            out_specs=pl.BlockSpec((tb, sem_p), lambda b, s: (b, 0)),
            scratch_shapes=[pltpu.VMEM((tb, c), jnp.float32)],  # pooled-sum accumulator
        )

        return pl.pallas_call(
            functools.partial(dae_kernel, num_layers=num_layers),
            out_shape=jax.ShapeDtypeStruct((n_pad, sem_p), jnp.float32),
            grid_spec=grid_spec,
            compiler_params=pltpu.CompilerParams(
                dimension_semantics=("parallel", "arbitrary"),
                vmem_limit_bytes=vmem_limit,
            ),
        )(img, folded["wv"], folded["b1"], folded["wh"], folded["bh"],
          folded["wr"], folded["br"])

    try:
        out = run(use_pipeline_mode=True)
    except Exception:
        # Fallback for jax builds where BlockSpec.pipeline_mode is not supported.
        out = run(use_pipeline_mode=False)

    return out[:n, :num_semantics]


# ----------------------------------------------------------------------------- reference
def _bn(x, g, b, m, v):
    return (x - m) * jax.lax.rsqrt(v + EPS) * g + b


def dae_forward_ref(images, params, num_layers):
    """Pure-JAX f32 reference on the raw (un-folded) parameters."""
    n, c, h, w = images.shape
    pooled = jnp.mean(images.reshape(n, c, h * w), axis=-1)
    x = pooled @ params["wv"] + params["bv"]
    x = _bn(x, params["bn1g"], params["bn1b"], params["bn1m"], params["bn1v"])
    x = jnp.maximum(x, 0.0)
    for _ in range(num_layers - 1):
        x = x @ params["wh"] + params["bh"]
        x = _bn(x, params["bnhg"], params["bnhb"], params["bnhm"], params["bnhv"])
        x = jnp.maximum(x, 0.0)
    y = x @ params["wr"] + params["br"]
    y = _bn(y, params["bnrg"], params["bnrb"], params["bnrm"], params["bnrv"])
    return y


# ----------------------------------------------------------------------------- main
if __name__ == "__main__":
    batch, channels, spatial = 2, 4, 16
    num_layers, num_nodes, num_semantics = 3, 32, 8

    key = jax.random.PRNGKey(0)
    k_img, k_par = jax.random.split(key)
    images = jax.random.normal(k_img, (batch, channels, spatial, spatial), jnp.float32)
    params = make_params(k_par, channels, num_nodes, num_semantics)

    out = dae_forward(images, params, num_layers, num_nodes, num_semantics)
    out = jax.block_until_ready(out)

    ref = dae_forward_ref(images, params, num_layers)
    # bf16 streaming + bf16 folded weights -> loosened tolerance vs. f32 reference.
    np.testing.assert_allclose(np.asarray(out), np.asarray(ref), rtol=2e-2, atol=2e-2)
    assert out.shape == (batch, num_semantics)
    print("KERNEL_OK")
</pallas_src>

<mosaic_0001>
module attributes {stable_mosaic.version = 11 : i64} {
  func.func @dae_kernel(%arg0: i32, %arg1: i32, %arg2: memref<8x4x256xbf16, #tpu.memory_space<vmem>>, %arg3: memref<4x128xbf16, #tpu.memory_space<vmem>>, %arg4: memref<1x128xf32, #tpu.memory_space<vmem>>, %arg5: memref<128x128xbf16, #tpu.memory_space<vmem>>, %arg6: memref<1x128xf32, #tpu.memory_space<vmem>>, %arg7: memref<128x128xbf16, #tpu.memory_space<vmem>>, %arg8: memref<1x128xf32, #tpu.memory_space<vmem>>, %arg9: memref<8x128xf32, #tpu.memory_space<vmem>>, %arg10: memref<8x4xf32, #tpu.memory_space<vmem>>) attributes {dimension_semantics = [#tpu.dimension_semantics<parallel>, #tpu.dimension_semantics<arbitrary>], iteration_bounds = array<i64: 1, 1>, scalar_prefetch = 0 : i64, scratch_operands = 1 : i64, tpu.core_type = #tpu.core_type<tc>, window_params = [{transform_indices = @transform_0, window_bounds = array<i64: 8, 4, 256>}, {pipeline_mode = #tpu.pipeline_mode<synchronous>, transform_indices = @transform_1, window_bounds = array<i64: 4, 128>}, {pipeline_mode = #tpu.pipeline_mode<synchronous>, transform_indices = @transform_2, window_bounds = array<i64: 1, 128>}, {pipeline_mode = #tpu.pipeline_mode<synchronous>, transform_indices = @transform_3, window_bounds = array<i64: 128, 128>}, {pipeline_mode = #tpu.pipeline_mode<synchronous>, transform_indices = @transform_4, window_bounds = array<i64: 1, 128>}, {pipeline_mode = #tpu.pipeline_mode<synchronous>, transform_indices = @transform_5, window_bounds = array<i64: 128, 128>}, {pipeline_mode = #tpu.pipeline_mode<synchronous>, transform_indices = @transform_6, window_bounds = array<i64: 1, 128>}, {transform_indices = @transform_7, window_bounds = array<i64: 8, 128>}]} {
    %c0_i32 = arith.constant 0 : i32
    %0 = arith.cmpi eq, %arg1, %c0_i32 : i32
    %1 = arith.extui %0 : i1 to i32
    %c0_i32_0 = arith.constant 0 : i32
    %2 = arith.cmpi ne, %1, %c0_i32_0 : i32
    scf.if %2 {
      %cst_9 = arith.constant 0.000000e+00 : f32
      %12 = vector.broadcast %cst_9 : f32 to vector<8x4xf32>
      %c0_10 = arith.constant 0 : index
      %c0_11 = arith.constant 0 : index
      %13 = vector.load %arg10[%c0_10, %c0_11] : memref<8x4xf32, #tpu.memory_space<vmem>>, vector<8x4xf32>
      tpu.vector_store %arg10[%c0_10, %c0_11], %12 {strides = array<i32>} : memref<8x4xf32, #tpu.memory_space<vmem>>, vector<8x4xf32>,
    } else {
    }
    %c0 = arith.constant 0 : index
    %c0_1 = arith.constant 0 : index
    %3 = vector.load %arg10[%c0, %c0_1] : memref<8x4xf32, #tpu.memory_space<vmem>>, vector<8x4xf32>
    %c0_2 = arith.constant 0 : index
    %c0_3 = arith.constant 0 : index
    %c0_4 = arith.constant 0 : index
    %4 = vector.load %arg2[%c0_2, %c0_3, %c0_4] : memref<8x4x256xbf16, #tpu.memory_space<vmem>>, vector<8x4x256xbf16>
    %5 = arith.extf %4 : vector<8x4x256xbf16> to vector<8x4x256xf32>
    %cst = arith.constant dense<0.000000e+00> : vector<8x4xf32>
    %6 = vector.multi_reduction <add>, %5, %cst [2] : vector<8x4x256xf32> to vector<8x4xf32>
    %7 = arith.addf %3, %6 : vector<8x4xf32>
    %c0_5 = arith.constant 0 : index
    %c0_6 = arith.constant 0 : index
    %8 = vector.load %arg10[%c0_5, %c0_6] : memref<8x4xf32, #tpu.memory_space<vmem>>, vector<8x4xf32>
    tpu.vector_store %arg10[%c0_5, %c0_6], %7 {strides = array<i32>} : memref<8x4xf32, #tpu.memory_space<vmem>>, vector<8x4xf32>,
    %c0_i32_7 = arith.constant 0 : i32
    %9 = arith.cmpi eq, %arg1, %c0_i32_7 : i32
    %10 = arith.extui %9 : i1 to i32
    %c0_i32_8 = arith.constant 0 : i32
    %11 = arith.cmpi ne, %10, %c0_i32_8 : i32
    scf.if %11 {
      %c0_9 = arith.constant 0 : index
      %c0_10 = arith.constant 0 : index
      %12 = vector.load %arg10[%c0_9, %c0_10] : memref<8x4xf32, #tpu.memory_space<vmem>>, vector<8x4xf32>
      %13 = arith.truncf %12 : vector<8x4xf32> to vector<8x4xbf16>
      %c0_11 = arith.constant 0 : index
      %c0_12 = arith.constant 0 : index
      %14 = vector.load %arg3[%c0_11, %c0_12] : memref<4x128xbf16, #tpu.memory_space<vmem>>, vector<4x128xbf16>
      %cst_13 = arith.constant dense<0.000000e+00> : vector<8x128xf32>
      %15 = tpu.matmul %13, %14, %cst_13 {dimension_numbers = #tpu.dot_dimension_numbers<[1], [0], [0], [1], [0, 0, 1, 1], [], []>} : vector<8x4xbf16>, vector<4x128xbf16>, vector<8x128xf32> -> vector<8x128xf32>
      %c0_14 = arith.constant 0 : index
      %c0_15 = arith.constant 0 : index
      %16 = vector.load %arg4[%c0_14, %c0_15] : memref<1x128xf32, #tpu.memory_space<vmem>>, vector<1x128xf32>
      %17 = vector.broadcast %16 : vector<1x128xf32> to vector<8x128xf32>
      %18 = arith.addf %15, %17 : vector<8x128xf32>
      %cst_16 = arith.constant 0.000000e+00 : f32
      %19 = vector.broadcast %cst_16 : f32 to vector<8x128xf32>
      %20 = arith.maximumf %18, %19 : vector<8x128xf32>
      %c0_i32_17 = arith.constant 0 : i32
      %21 = arith.truncf %20 : vector<8x128xf32> to vector<8x128xbf16>
      %c0_18 = arith.constant 0 : index
      %c0_19 = arith.constant 0 : index
      %22 = vector.load %arg5[%c0_18, %c0_19] : memref<128x128xbf16, #tpu.memory_space<vmem>>, vector<128x128xbf16>
      %cst_20 = arith.constant dense<0.000000e+00> : vector<8x128xf32>
      %23 = tpu.matmul %21, %22, %cst_20 {dimension_numbers = #tpu.dot_dimension_numbers<[1], [0], [0], [1], [0, 0, 1, 1], [], []>} : vector<8x128xbf16>, vector<128x128xbf16>, vector<8x128xf32> -> vector<8x128xf32>
      %c0_21 = arith.constant 0 : index
      %c0_22 = arith.constant 0 : index
      %24 = vector.load %arg6[%c0_21, %c0_22] : memref<1x128xf32, #tpu.memory_space<vmem>>, vector<1x128xf32>
      %25 = vector.broadcast %24 : vector<1x128xf32> to vector<8x128xf32>
      %26 = arith.addf %23, %25 : vector<8x128xf32>
      %cst_23 = arith.constant 0.000000e+00 : f32
      %27 = vector.broadcast %cst_23 : f32 to vector<8x128xf32>
      %28 = arith.maximumf %26, %27 : vector<8x128xf32>
      %c1_i32 = arith.constant 1 : i32
      %29 = arith.truncf %28 : vector<8x128xf32> to vector<8x128xbf16>
      %c0_24 = arith.constant 0 : index
      %c0_25 = arith.constant 0 : index
      %30 = vector.load %arg5[%c0_24, %c0_25] : memref<128x128xbf16, #tpu.memory_space<vmem>>, vector<128x128xbf16>
      %cst_26 = arith.constant dense<0.000000e+00> : vector<8x128xf32>
      %31 = tpu.matmul %29, %30, %cst_26 {dimension_numbers = #tpu.dot_dimension_numbers<[1], [0], [0], [1], [0, 0, 1, 1], [], []>} : vector<8x128xbf16>, vector<128x128xbf16>, vector<8x128xf32> -> vector<8x128xf32>
      %c0_27 = arith.constant 0 : index
      %c0_28 = arith.constant 0 : index
      %32 = vector.load %arg6[%c0_27, %c0_28] : memref<1x128xf32, #tpu.memory_space<vmem>>, vector<1x128xf32>
      %33 = vector.broadcast %32 : vector<1x128xf32> to vector<8x128xf32>
      %34 = arith.addf %31, %33 : vector<8x128xf32>
      %cst_29 = arith.constant 0.000000e+00 : f32
      %35 = vector.broadcast %cst_29 : f32 to vector<8x128xf32>
      %36 = arith.maximumf %34, %35 : vector<8x128xf32>
      %37 = arith.truncf %36 : vector<8x128xf32> to vector<8x128xbf16>
      %c0_30 = arith.constant 0 : index
      %c0_31 = arith.constant 0 : index
      %38 = vector.load %arg7[%c0_30, %c0_31] : memref<128x128xbf16, #tpu.memory_space<vmem>>, vector<128x128xbf16>
      %cst_32 = arith.constant dense<0.000000e+00> : vector<8x128xf32>
      %39 = tpu.matmul %37, %38, %cst_32 {dimension_numbers = #tpu.dot_dimension_numbers<[1], [0], [0], [1], [0, 0, 1, 1], [], []>} : vector<8x128xbf16>, vector<128x128xbf16>, vector<8x128xf32> -> vector<8x128xf32>
      %c0_33 = arith.constant 0 : index
      %c0_34 = arith.constant 0 : index
      %40 = vector.load %arg8[%c0_33, %c0_34] : memref<1x128xf32, #tpu.memory_space<vmem>>, vector<1x128xf32>
      %41 = vector.broadcast %40 : vector<1x128xf32> to vector<8x128xf32>
      %42 = arith.addf %39, %41 : vector<8x128xf32>
      %c0_35 = arith.constant 0 : index
      %c0_36 = arith.constant 0 : index
      %43 = vector.load %arg9[%c0_35, %c0_36] : memref<8x128xf32, #tpu.memory_space<vmem>>, vector<8x128xf32>
      tpu.vector_store %arg9[%c0_35, %c0_36], %42 {strides = array<i32>} : memref<8x128xf32, #tpu.memory_space<vmem>>, vector<8x128xf32>,
    } else {
    }
    return
  }
  func.func @transform_0(%arg0: i32, %arg1: i32) -> (i32, i32, i32) {
    %c0_i32 = arith.constant 0 : i32
    %c0_i32_0 = arith.constant 0 : i32
    return %arg0, %c0_i32, %arg1 : i32, i32, i32
  }
  func.func @transform_1(%arg0: i32, %arg1: i32) -> (i32, i32) {
    %c0_i32 = arith.constant 0 : i32
    %c0_i32_0 = arith.constant 0 : i32
    %c0_i32_1 = arith.constant 0 : i32
    return %c0_i32, %c0_i32_0 : i32, i32
  }
  func.func @transform_2(%arg0: i32, %arg1: i32) -> (i32, i32) {
    %c0_i32 = arith.constant 0 : i32
    %c0_i32_0 = arith.constant 0 : i32
    %c0_i32_1 = arith.constant 0 : i32
    return %c0_i32, %c0_i32_0 : i32, i32
  }
  func.func @transform_3(%arg0: i32, %arg1: i32) -> (i32, i32) {
    %c0_i32 = arith.constant 0 : i32
    %c0_i32_0 = arith.constant 0 : i32
    %c0_i32_1 = arith.constant 0 : i32
    return %c0_i32, %c0_i32_0 : i32, i32
  }
  func.func @transform_4(%arg0: i32, %arg1: i32) -> (i32, i32) {
    %c0_i32 = arith.constant 0 : i32
    %c0_i32_0 = arith.constant 0 : i32
    %c0_i32_1 = arith.constant 0 : i32
    return %c0_i32, %c0_i32_0 : i32, i32
  }
  func.func @transform_5(%arg0: i32, %arg1: i32) -> (i32, i32) {
    %c0_i32 = arith.constant 0 : i32
    %c0_i32_0 = arith.constant 0 : i32
    %c0_i32_1 = arith.constant 0 : i32
    return %c0_i32, %c0_i32_0 : i32, i32
  }
  func.func @transform_6(%arg0: i32, %arg1: i32) -> (i32, i32) {
    %c0_i32 = arith.constant 0 : i32
    %c0_i32_0 = arith.constant 0 : i32
    %c0_i32_1 = arith.constant 0 : i32
    return %c0_i32, %c0_i32_0 : i32, i32
  }
  func.func @transform_7(%arg0: i32, %arg1: i32) -> (i32, i32) {
    %c0_i32 = arith.constant 0 : i32
    %c0_i32_0 = arith.constant 0 : i32
    return %arg0, %c0_i32 : i32, i32
  }
}

</mosaic_0001>

<llo_original>
// kernel: tpu_custom_call.1
$region0: #{tpu_custom_call.1}
  #allocation0 [shape = 'u32[]', space=smem, size = 0x4, offset = 0x4, fixed_abs, tag = 'smem constant byte address 0x4 - core index']
  #allocation1 [shape = 'u32[144,128]{1,0:T(1,128)}', space=vmem, size = 0x12000, scoped, tag = 'internal scratch']
  #allocation2 [shape = 'f32[8,4]{1,0:T(8,128)}', space=vmem, size = 0x1000, scoped, tag = 'scratch operand']
  %s0 = inlined_call_operand.hbm [shape: bf16[8,4,256], index: 0, kind: input, shape index: {}]
  %s1 = inlined_call_operand.vmem [shape: bf16[4,128], index: 1, kind: input, shape index: {}]
  %s2 = inlined_call_operand.vmem [shape: f32[1,128], index: 2, kind: input, shape index: {}]
  %s3 = inlined_call_operand.hbm [shape: bf16[128,128], index: 3, kind: input, shape index: {}]
  %s4 = inlined_call_operand.vmem [shape: f32[1,128], index: 4, kind: input, shape index: {}]
  %s5 = inlined_call_operand.hbm [shape: bf16[128,128], index: 5, kind: input, shape index: {}]
  %s6 = inlined_call_operand.vmem [shape: f32[1,128], index: 6, kind: input, shape index: {}]
  %s7 = inlined_call_operand.hbm [shape: f32[8,128], index: 7, kind: output, shape index: {}]
  %s8 = sld [smem:[#allocation0]]
  $region58: #{tpu_custom_call.1} parent=0
    _
  %s10 = ssub.s32 1, %s8
  %s11 = scalar_select 0, %s10, %s8
  $region1: #{tpu_custom_call.1} parent=0
    #allocation3 [shape = 'u8[16384]{0}', space=vmem, size = 0x4000, scoped, tag = 'input window, operand 0, single buffered']
    #allocation4 [shape = 's32[1]{0}', space=sflag, size = 0x4, scoped, tag = 'scoped memory for tpu_custom_call.1']
    #allocation5 [shape = 's32[1]{0}', space=sflag, size = 0x4, scoped, tag = 'scoped memory for tpu_custom_call.1']
    #allocation6 [shape = 'u8[32768]{0}', space=vmem, size = 0x8000, scoped, tag = 'input window, operand 3, single buffered']
    #allocation7 [shape = 's32[1]{0}', space=sflag, size = 0x4, scoped, tag = 'scoped memory for tpu_custom_call.1']
    #allocation8 [shape = 'u8[32768]{0}', space=vmem, size = 0x8000, scoped, tag = 'input window, operand 5, single buffered']
    #allocation9 [shape = 'u8[4096]{0}', space=vmem, size = 0x1000, scoped, tag = 'output window, operand 0, single buffered']
    %12 = vsyncpa [#allocation4], 0
    %13 = vsyncpa [#allocation7], 0
    %14 = vsyncpa [#allocation5], 0
    // Predicated region
    $region2: #{tpu_custom_call.1} parent=1 // pred_check
      _
    $region3: #{tpu_custom_call.1} parent=1 // pred_check_branch
      %16 = sbr.rel (0) target = $region5
    $region4: #{tpu_custom_call.1} parent=1 // pred_region
      %s18 = ssub.s32 512, 512
      %19 = vsyncadd [#allocation4], %s18
      %s20 = sshll.u32 [#allocation3], 4
      %s21 = int_to_ptr.vmem [resolvable:$true] %s20
      %26 = dma.hbm_to_vmem [thread:$0]  %s0, 512, %s21, [#allocation4], 64, 64, 4
    $region5: #{tpu_custom_call.1} parent=1 // pred_fallthru
      _
    // Predicated region
    $region6: #{tpu_custom_call.1} parent=1 // pred_check
      _
    $region7: #{tpu_custom_call.1} parent=1 // pred_check_branch
      %28 = sbr.rel (0) target = $region9
    $region8: #{tpu_custom_call.1} parent=1 // pred_region
      _
    $region9: #{tpu_custom_call.1} parent=1 // pred_fallthru
      _
    // Predicated region
    $region10: #{tpu_custom_call.1} parent=1 // pred_check
      _
    $region11: #{tpu_custom_call.1} parent=1 // pred_check_branch
      %30 = sbr.rel (0) target = $region13
    $region12: #{tpu_custom_call.1} parent=1 // pred_region
      _
    $region13: #{tpu_custom_call.1} parent=1 // pred_fallthru
      _
    // Predicated region
    $region14: #{tpu_custom_call.1} parent=1 // pred_check
      _
    $region15: #{tpu_custom_call.1} parent=1 // pred_check_branch
      %32 = sbr.rel (0) target = $region17
    $region16: #{tpu_custom_call.1} parent=1 // pred_region
      %s34 = ssub.s32 1024, 1024
      %35 = vsyncadd [#allocation7], %s34
      %s36 = sshll.u32 [#allocation6], 4
      %s37 = int_to_ptr.vmem [resolvable:$true] %s36
      %42 = dma.hbm_to_vmem [thread:$0]  %s3, 1024, %s37, [#allocation7], 64, 64, 4
    $region17: #{tpu_custom_call.1} parent=1 // pred_fallthru
      _
    // Predicated region
    $region18: #{tpu_custom_call.1} parent=1 // pred_check
      _
    $region19: #{tpu_custom_call.1} parent=1 // pred_check_branch
      %44 = sbr.rel (0) target = $region21
    $region20: #{tpu_custom_call.1} parent=1 // pred_region
      _
    $region21: #{tpu_custom_call.1} parent=1 // pred_fallthru
      _
    // Predicated region
    $region22: #{tpu_custom_call.1} parent=1 // pred_check
      _
    $region23: #{tpu_custom_call.1} parent=1 // pred_check_branch
      %46 = sbr.rel (0) target = $region25
    $region24: #{tpu_custom_call.1} parent=1 // pred_region
      %s48 = ssub.s32 1024, 1024
      %49 = vsyncadd [#allocation7], %s48
      %s50 = sshll.u32 [#allocation8], 4
      %s51 = int_to_ptr.vmem [resolvable:$true] %s50
      %56 = dma.hbm_to_vmem [thread:$0]  %s5, 1024, %s51, [#allocation7], 64, 64, 4
    $region25: #{tpu_custom_call.1} parent=1 // pred_fallthru
      _
    // Predicated region
    $region26: #{tpu_custom_call.1} parent=1 // pred_check
      _
    $region27: #{tpu_custom_call.1} parent=1 // pred_check_branch
      %58 = sbr.rel (0) target = $region29
    $region28: #{tpu_custom_call.1} parent=1 // pred_region
      _
    $region29: #{tpu_custom_call.1} parent=1 // pred_fallthru
      _
    // Predicated region
    $region30: #{tpu_custom_call.1} parent=1 // pred_check
      _
    $region31: #{tpu_custom_call.1} parent=1 // pred_check_branch
      %60 = sbr.rel (0) target = $region33
    $region32: #{tpu_custom_call.1} parent=1 // pred_region
      %61 = dma.done [#allocation4], 512
    $region33: #{tpu_custom_call.1} parent=1 // pred_fallthru
      _
    // Predicated region
    $region34: #{tpu_custom_call.1} parent=1 // pred_check
      _
    $region35: #{tpu_custom_call.1} parent=1 // pred_check_branch
      %63 = sbr.rel (0) target = $region37
    $region36: #{tpu_custom_call.1} parent=1 // pred_region
      %64 = dma.done [#allocation7], 1024
    $region37: #{tpu_custom_call.1} parent=1 // pred_fallthru
      _
    // Predicated region
    $region38: #{tpu_custom_call.1} parent=1 // pred_check
      _
    $region39: #{tpu_custom_call.1} parent=1 // pred_check_branch
      %66 = sbr.rel (0) target = $region41
    $region40: #{tpu_custom_call.1} parent=1 // pred_region
      %67 = dma.done [#allocation7], 1024
    $region41: #{tpu_custom_call.1} parent=1 // pred_fallthru
      _
    %p69 = scmp.eq.s32.totalorder 0, 0
    // Predicated region
    $region42: #{tpu_custom_call.1} parent=1 // pred_check
      %p70 = pneg %p69
    $region43: #{tpu_custom_call.1} parent=1 // pred_check_branch
      %72 = sbr.rel (%p70) target = $region45
    $region44: #{tpu_custom_call.1} parent=1 // pred_region
      %vm73 = vcmask 31744
      %74 = vst.msk [vmem:[#allocation2] sm:$0xff] %vm73, 0.0
    $region45: #{tpu_custom_call.1} parent=1 // pred_fallthru
      _
    %v75 = vld [vmem:[#allocation2] sm:$0xff]
    %v76 = vld [vmem:[#allocation3] sm:$0xf]
    %v77 = vld [vmem:[#allocation3 + $0x4] sm:$0xf]
    %v78 = vld [vmem:[#allocation3 + $0x8] sm:$0xf]
    %v79 = vld [vmem:[#allocation3 + $0xc] sm:$0xf]
    %v80 = vld [vmem:[#allocation3 + $0x10] sm:$0xf]
    %v81 = vld [vmem:[#allocation3 + $0x14] sm:$0xf]
    %v82 = vld [vmem:[#allocation3 + $0x18] sm:$0xf]
    %v83 = vld [vmem:[#allocation3 + $0x1c] sm:$0xf]
    %v84 = vunpack.c.l.bf16 %v76
    %v85 = vunpack.c.l.bf16 %v77
    %v86 = vunpack.c.l.bf16 %v78
    %v87 = vunpack.c.l.bf16 %v79
    %v88 = vunpack.c.l.bf16 %v80
    %v89 = vunpack.c.l.bf16 %v81
    %v90 = vunpack.c.l.bf16 %v82
    %v91 = vunpack.c.l.bf16 %v83
    %v100 = vcombine.high %v84, %v84
    %v101 = vcombine.high %v85, %v85
    %v102 = vcombine.high %v86, %v86
    %v103 = vcombine.high %v87, %v87
    %v104 = vcombine.high %v88, %v88
    %v105 = vcombine.high %v89, %v89
    %v106 = vcombine.high %v90, %v90
    %v107 = vcombine.high %v91, %v91
    %vm116 = vcmask 1043456
    %v117 = vsel %vm116, %v84, 0.0
    %v118 = vsel %vm116, %v100, 0.0
    %v119 = vadd.f32 %v117, %v118
    %120 = vadd.xlane.f32.xlu0 %v119
    %v121 = vpop.xlane.xlu0 %120
    %v122 = vsel %vm116, %v85, 0.0
    %v123 = vsel %vm116, %v101, 0.0
    %v124 = vadd.f32 %v122, %v123
    %125 = vadd.xlane.f32.xlu0 %v124
    %v126 = vpop.xlane.xlu0 %125
    %v127 = vsel %vm116, %v86, 0.0
    %v128 = vsel %vm116, %v102, 0.0
    %v129 = vadd.f32 %v127, %v128
    %130 = vadd.xlane.f32.xlu0 %v129
    %v131 = vpop.xlane.xlu0 %130
    %v132 = vsel %vm116, %v87, 0.0
    %v133 = vsel %vm116, %v103, 0.0
    %v134 = vadd.f32 %v132, %v133
    %135 = vadd.xlane.f32.xlu0 %v134
    %v136 = vpop.xlane.xlu0 %135
    %v137 = vsel %vm116, %v88, 0.0
    %v138 = vsel %vm116, %v104, 0.0
    %v139 = vadd.f32 %v137, %v138
    %140 = vadd.xlane.f32.xlu0 %v139
    %v141 = vpop.xlane.xlu0 %140
    %v142 = vsel %vm116, %v89, 0.0
    %v143 = vsel %vm116, %v105, 0.0
    %v144 = vadd.f32 %v142, %v143
    %145 = vadd.xlane.f32.xlu0 %v144
    %v146 = vpop.xlane.xlu0 %145
    %v147 = vsel %vm116, %v90, 0.0
    %v148 = vsel %vm116, %v106, 0.0
    %v149 = vadd.f32 %v147, %v148
    %150 = vadd.xlane.f32.xlu0 %v149
    %v151 = vpop.xlane.xlu0 %150
    %v152 = vsel %vm116, %v91, 0.0
    %v153 = vsel %vm116, %v107, 0.0
    %v154 = vadd.f32 %v152, %v153
    %155 = vadd.xlane.f32.xlu0 %v154
    %v156 = vpop.xlane.xlu0 %155
    %v165 = vlaneseq
    %v166 = vand.u32 %v165, 127
    %v167 = vlaneseq
    %v168 = vshrl.u32 %v167, 7
    %v169 = vsub.s32 %v166, %v168
    %v170 = vrot.slane %v121, %v169
    %v171 = vlaneseq
    %v172 = vshrl.u32 %v171, 7
    %v173 = vsub.s32 %v166, %v172
    %v174 = vrot.slane %v126, %v173
    %v175 = vlaneseq
    %v176 = vshrl.u32 %v175, 7
    %v177 = vsub.s32 %v166, %v176
    %v178 = vrot.slane %v131, %v177
    %v179 = vlaneseq
    %v180 = vshrl.u32 %v179, 7
    %v181 = vsub.s32 %v166, %v180
    %v182 = vrot.slane %v136, %v181
    %v183 = vlaneseq
    %v184 = vshrl.u32 %v183, 7
    %v185 = vsub.s32 %v166, %v184
    %v186 = vrot.slane %v141, %v185
    %v187 = vlaneseq
    %v188 = vshrl.u32 %v187, 7
    %v189 = vsub.s32 %v166, %v188
    %v190 = vrot.slane %v146, %v189
    %v191 = vlaneseq
    %v192 = vshrl.u32 %v191, 7
    %v193 = vsub.s32 %v166, %v192
    %v194 = vrot.slane %v151, %v193
    %v195 = vlaneseq
    %v196 = vshrl.u32 %v195, 7
    %v197 = vsub.s32 %v166, %v196
    %v198 = vrot.slane %v156, %v197
    %vm199 = vcmask 1041409
    %v200 = vsel %vm199, %v174, %v170
    %vm201 = vcmask 1042434
    %v202 = vsel %vm201, %v178, %v200
    %vm203 = vcmask 1043459
    %v204 = vsel %vm203, %v182, %v202
    %vm205 = vcmask 1044484
    %v206 = vsel %vm205, %v186, %v204
    %vm207 = vcmask 1045509
    %v208 = vsel %vm207, %v190, %v206
    %vm209 = vcmask 1046534
    %v210 = vsel %vm209, %v194, %v208
    %vm211 = vcmask 1047559
    %v212 = vsel %vm211, %v198, %v210
    %v214 = vadd.f32 %v75, %v212
    %vm215 = vcmask 31744
    %216 = vst.msk [vmem:[#allocation2] sm:$0xff] %vm215, %v214
    // Predicated region
    $region46: #{tpu_custom_call.1} parent=1 // pred_check
      %p217 = pneg %p69
    $region47: #{tpu_custom_call.1} parent=1 // pred_check_branch
      %219 = sbr.rel (%p217) target = $region49
    $region48: #{tpu_custom_call.1} parent=1 // pred_region
      %v220 = vld [vmem:[#allocation2] sm:$0xff]
      %v221 = vpack.c.bf16 %v220, %v220
      %v222 = vld [vmem:[%s1] sm:$0x3]
      %v223 = vld [vmem:[%s2] sm:$0x1]
      %v225 = vlaneseq
      %v226 = vshrl.u32 %v225, 7
      %v227 = vsub.s32 0, %v226
      %v228 = vrot.slane %v223, %v227
      %v231 = vsel %vm215, %v221, 0
      %vm233 = vcmask 1041408
      %v235 = vsel %vm233, %v222, 0
      %237 = vmatprep.subr.bf16.mxu0 0
      %238 = vmatpush1.bf16.msra.mxu0 %v235
      %239 = vmatprep.subr.bf16.mxu0 0
      %240 = vmatpush1.bf16.msra.mxu0 0
      %241 = vmatprep.subr.bf16.mxu0 0
      %242 = vmatpush1.bf16.msra.mxu0 0
      %243 = vmatprep.subr.bf16.mxu0 0
      %244 = vmatpush1.bf16.msra.mxu0 0
      %245 = vmatprep.subr.bf16.mxu0 0
      %246 = vmatpush1.bf16.msra.mxu0 0
      %247 = vmatprep.subr.bf16.mxu0 0
      %248 = vmatpush1.bf16.msra.mxu0 0
      %249 = vmatprep.subr.bf16.mxu0 0
      %250 = vmatpush1.bf16.msra.mxu0 0
      %251 = vmatprep.subr.bf16.mxu0 0
      %252 = vmatpush1.bf16.msra.mxu0 0
      %253 = vmatprep.subr.bf16.mxu0 0
      %254 = vmatpush1.bf16.msra.mxu0 0
      %255 = vmatprep.subr.bf16.mxu0 0
      %256 = vmatpush1.bf16.msra.mxu0 0
      %257 = vmatprep.subr.bf16.mxu0 0
      %258 = vmatpush1.bf16.msra.mxu0 0
      %259 = vmatprep.subr.bf16.mxu0 0
      %260 = vmatpush1.bf16.msra.mxu0 0
      %261 = vmatprep.subr.bf16.mxu0 0
      %262 = vmatpush1.bf16.msra.mxu0 0
      %263 = vmatprep.subr.bf16.mxu0 0
      %264 = vmatpush1.bf16.msra.mxu0 0
      %265 = vmatprep.subr.bf16.mxu0 0
      %266 = vmatpush1.bf16.msra.mxu0 0
      %267 = vmatprep.subr.bf16.mxu0 0
      %268 = vmatpush1.bf16.msra.mxu0 0
      %269 = vmatprep.mubr.bf16.mxu0 0
      %270 = vmatmul.mubr.bf16.gmra.mrb[0].mxu0 %v231
      %v271 = vpop.f32.mrb[0].mxu0
      %v272 = vadd.f32 %v228, %v271
      %v273 = vpop.f32.mrb[0].mxu0
      %v274 = vpop.f32.mrb[0].mxu0
      %v275 = vpop.f32.mrb[0].mxu0
      %276 = vdwg.mxu0
      %v277 = vmax.f32 %v272, 0.0
      %v278 = vpack.c.bf16 %v277, %v277
      %v279 = vld [vmem:[#allocation6] sm:$0xf]
      %v280 = vld [vmem:[#allocation6 + $0x4] sm:$0xf]
      %v281 = vld [vmem:[#allocation6 + $0x8] sm:$0xf]
      %v282 = vld [vmem:[#allocation6 + $0xc] sm:$0xf]
      %v283 = vld [vmem:[#allocation6 + $0x10] sm:$0xf]
      %v284 = vld [vmem:[#allocation6 + $0x14] sm:$0xf]
      %v285 = vld [vmem:[#allocation6 + $0x18] sm:$0xf]
      %v286 = vld [vmem:[#allocation6 + $0x1c] sm:$0xf]
      %v287 = vld [vmem:[#allocation6 + $0x20] sm:$0xf]
      %v288 = vld [vmem:[#allocation6 + $0x24] sm:$0xf]
      %v289 = vld [vmem:[#allocation6 + $0x28] sm:$0xf]
      %v290 = vld [vmem:[#allocation6 + $0x2c] sm:$0xf]
      %v291 = vld [vmem:[#allocation6 + $0x30] sm:$0xf]
      %v292 = vld [vmem:[#allocation6 + $0x34] sm:$0xf]
      %v293 = vld [vmem:[#allocation6 + $0x38] sm:$0xf]
      %v294 = vld [vmem:[#allocation6 + $0x3c] sm:$0xf]
      %v295 = vld [vmem:[%s4] sm:$0x1]
      %v297 = vlaneseq
      %v298 = vshrl.u32 %v297, 7
      %v299 = vsub.s32 0, %v298
      %v300 = vrot.slane %v295, %v299
      %v318 = vunpack.c.l.b16 %v279
      %v319 = vunpack.c.l.b16 %v280
      %v320 = vunpack.c.l.b16 %v281
      %v321 = vunpack.c.l.b16 %v282
      %v322 = vunpack.c.l.b16 %v283
      %v323 = vunpack.c.l.b16 %v284
      %v324 = vunpack.c.l.b16 %v285
      %v325 = vunpack.c.l.b16 %v286
      %v326 = vunpack.c.l.b16 %v287
      %v327 = vunpack.c.l.b16 %v288
      %v328 = vunpack.c.l.b16 %v289
      %v329 = vunpack.c.l.b16 %v290
      %v330 = vunpack.c.l.b16 %v291
      %v331 = vunpack.c.l.b16 %v292
      %v332 = vunpack.c.l.b16 %v293
      %v333 = vunpack.c.l.b16 %v294
      %v334 = vpack.c.b16 %v319, %v318
      %v335 = vpack.c.b16 %v321, %v320
      %v336 = vpack.c.b16 %v323, %v322
      %v337 = vpack.c.b16 %v325, %v324
      %v338 = vpack.c.b16 %v327, %v326
      %v339 = vpack.c.b16 %v329, %v328
      %v340 = vpack.c.b16 %v331, %v330
      %v341 = vpack.c.b16 %v333, %v332
      %350 = vmatprep.subr.bf16.mxu0 0
      %351 = vmatpush1.bf16.msra.mxu0 %v334
      %352 = vmatprep.subr.bf16.mxu0 0
      %353 = vmatpush1.bf16.msra.mxu0 %v335
      %354 = vmatprep.subr.bf16.mxu0 0
      %355 = vmatpush1.bf16.msra.mxu0 %v336
      %356 = vmatprep.subr.bf16.mxu0 0
      %357 = vmatpush1.bf16.msra.mxu0 %v337
      %358 = vmatprep.subr.bf16.mxu0 0
      %359 = vmatpush1.bf16.msra.mxu0 %v338
      %360 = vmatprep.subr.bf16.mxu0 0
      %361 = vmatpush1.bf16.msra.mxu0 %v339
      %362 = vmatprep.subr.bf16.mxu0 0
      %363 = vmatpush1.bf16.msra.mxu0 %v340
      %364 = vmatprep.subr.bf16.mxu0 0
      %365 = vmatpush1.bf16.msra.mxu0 %v341
      %366 = vmatprep.subr.bf16.mxu0 0
      %367 = vmatpush1.bf16.msra.mxu0 0
      %368 = vmatprep.subr.bf16.mxu0 0
      %369 = vmatpush1.bf16.msra.mxu0 0
      %370 = vmatprep.subr.bf16.mxu0 0
      %371 = vmatpush1.bf16.msra.mxu0 0
      %372 = vmatprep.subr.bf16.mxu0 0
      %373 = vmatpush1.bf16.msra.mxu0 0
      %374 = vmatprep.subr.bf16.mxu0 0
      %375 = vmatpush1.bf16.msra.mxu0 0
      %376 = vmatprep.subr.bf16.mxu0 0
      %377 = vmatpush1.bf16.msra.mxu0 0
      %378 = vmatprep.subr.bf16.mxu0 0
      %379 = vmatpush1.bf16.msra.mxu0 0
      %380 = vmatprep.subr.bf16.mxu0 0
      %381 = vmatpush1.bf16.msra.mxu0 0
      %382 = vmatprep.mubr.bf16.mxu0 0
      %383 = vmatmul.mubr.bf16.gmra.mrb[0].mxu0 %v278
      %v384 = vpop.f32.mrb[0].mxu0
      %v385 = vadd.f32 %v300, %v384
      %v386 = vpop.f32.mrb[0].mxu0
      %v387 = vpop.f32.mrb[0].mxu0
      %v388 = vpop.f32.mrb[0].mxu0
      %389 = vdwg.mxu0
      %v390 = vmax.f32 %v385, 0.0
      %v391 = vpack.c.bf16 %v390, %v390
      %392 = vmatprep.subr.bf16.mxu0 0
      %393 = vmatpush1.bf16.msra.mxu0 %v334
      %394 = vmatprep.subr.bf16.mxu0 0
      %395 = vmatpush1.bf16.msra.mxu0 %v335
      %396 = vmatprep.subr.bf16.mxu0 0
      %397 = vmatpush1.bf16.msra.mxu0 %v336
      %398 = vmatprep.subr.bf16.mxu0 0
      %399 = vmatpush1.bf16.msra.mxu0 %v337
      %400 = vmatprep.subr.bf16.mxu0 0
      %401 = vmatpush1.bf16.msra.mxu0 %v338
      %402 = vmatprep.subr.bf16.mxu0 0
      %403 = vmatpush1.bf16.msra.mxu0 %v339
      %404 = vmatprep.subr.bf16.mxu0 0
      %405 = vmatpush1.bf16.msra.mxu0 %v340
      %406 = vmatprep.subr.bf16.mxu0 0
      %407 = vmatpush1.bf16.msra.mxu0 %v341
      %408 = vmatprep.subr.bf16.mxu0 0
      %409 = vmatpush1.bf16.msra.mxu0 0
      %410 = vmatprep.subr.bf16.mxu0 0
      %411 = vmatpush1.bf16.msra.mxu0 0
      %412 = vmatprep.subr.bf16.mxu0 0
      %413 = vmatpush1.bf16.msra.mxu0 0
      %414 = vmatprep.subr.bf16.mxu0 0
      %415 = vmatpush1.bf16.msra.mxu0 0
      %416 = vmatprep.subr.bf16.mxu0 0
      %417 = vmatpush1.bf16.msra.mxu0 0
      %418 = vmatprep.subr.bf16.mxu0 0
      %419 = vmatpush1.bf16.msra.mxu0 0
      %420 = vmatprep.subr.bf16.mxu0 0
      %421 = vmatpush1.bf16.msra.mxu0 0
      %422 = vmatprep.subr.bf16.mxu0 0
      %423 = vmatpush1.bf16.msra.mxu0 0
      %424 = vmatprep.mubr.bf16.mxu0 0
      %425 = vmatmul.mubr.bf16.gmra.mrb[0].mxu0 %v391
      %v426 = vpop.f32.mrb[0].mxu0
      %v427 = vadd.f32 %v300, %v426
      %v428 = vpop.f32.mrb[0].mxu0
      %v429 = vpop.f32.mrb[0].mxu0
      %v430 = vpop.f32.mrb[0].mxu0
      %431 = vdwg.mxu0
      %v432 = vmax.f32 %v427, 0.0
      %v433 = vpack.c.bf16 %v432, %v432
      %v434 = vld [vmem:[#allocation8] sm:$0xf]
      %v435 = vld [vmem:[#allocation8 + $0x4] sm:$0xf]
      %v436 = vld [vmem:[#allocation8 + $0x8] sm:$0xf]
      %v437 = vld [vmem:[#allocation8 + $0xc] sm:$0xf]
      %v438 = vld [vmem:[#allocation8 + $0x10] sm:$0xf]
      %v439 = vld [vmem:[#allocation8 + $0x14] sm:$0xf]
      %v440 = vld [vmem:[#allocation8 + $0x18] sm:$0xf]
      %v441 = vld [vmem:[#allocation8 + $0x1c] sm:$0xf]
      %v442 = vld [vmem:[#allocation8 + $0x20] sm:$0xf]
      %v443 = vld [vmem:[#allocation8 + $0x24] sm:$0xf]
      %v444 = vld [vmem:[#allocation8 + $0x28] sm:$0xf]
      %v445 = vld [vmem:[#allocation8 + $0x2c] sm:$0xf]
      %v446 = vld [vmem:[#allocation8 + $0x30] sm:$0xf]
      %v447 = vld [vmem:[#allocation8 + $0x34] sm:$0xf]
      %v448 = vld [vmem:[#allocation8 + $0x38] sm:$0xf]
      %v449 = vld [vmem:[#allocation8 + $0x3c] sm:$0xf]
      %v450 = vld [vmem:[%s6] sm:$0x1]
      %v452 = vlaneseq
      %v453 = vshrl.u32 %v452, 7
      %v454 = vsub.s32 0, %v453
      %v455 = vrot.slane %v450, %v454
      %v473 = vunpack.c.l.b16 %v434
      %v474 = vunpack.c.l.b16 %v435
      %v475 = vunpack.c.l.b16 %v436
      %v476 = vunpack.c.l.b16 %v437
      %v477 = vunpack.c.l.b16 %v438
      %v478 = vunpack.c.l.b16 %v439
      %v479 = vunpack.c.l.b16 %v440
      %v480 = vunpack.c.l.b16 %v441
      %v481 = vunpack.c.l.b16 %v442
      %v482 = vunpack.c.l.b16 %v443
      %v483 = vunpack.c.l.b16 %v444
      %v484 = vunpack.c.l.b16 %v445
      %v485 = vunpack.c.l.b16 %v446
      %v486 = vunpack.c.l.b16 %v447
      %v487 = vunpack.c.l.b16 %v448
      %v488 = vunpack.c.l.b16 %v449
      %v489 = vpack.c.b16 %v474, %v473
      %v490 = vpack.c.b16 %v476, %v475
      %v491 = vpack.c.b16 %v478, %v477
      %v492 = vpack.c.b16 %v480, %v479
      %v493 = vpack.c.b16 %v482, %v481
      %v494 = vpack.c.b16 %v484, %v483
      %v495 = vpack.c.b16 %v486, %v485
      %v496 = vpack.c.b16 %v488, %v487
      %505 = vmatprep.subr.bf16.mxu0 0
      %506 = vmatpush1.bf16.msra.mxu0 %v489
      %507 = vmatprep.subr.bf16.mxu0 0
      %508 = vmatpush1.bf16.msra.mxu0 %v490
      %509 = vmatprep.subr.bf16.mxu0 0
      %510 = vmatpush1.bf16.msra.mxu0 %v491
      %511 = vmatprep.subr.bf16.mxu0 0
      %512 = vmatpush1.bf16.msra.mxu0 %v492
      %513 = vmatprep.subr.bf16.mxu0 0
      %514 = vmatpush1.bf16.msra.mxu0 %v493
      %515 = vmatprep.subr.bf16.mxu0 0
      %516 = vmatpush1.bf16.msra.mxu0 %v494
      %517 = vmatprep.subr.bf16.mxu0 0
      %518 = vmatpush1.bf16.msra.mxu0 %v495
      %519 = vmatprep.subr.bf16.mxu0 0
      %520 = vmatpush1.bf16.msra.mxu0 %v496
      %521 = vmatprep.subr.bf16.mxu0 0
      %522 = vmatpush1.bf16.msra.mxu0 0
      %523 = vmatprep.subr.bf16.mxu0 0
      %524 = vmatpush1.bf16.msra.mxu0 0
      %525 = vmatprep.subr.bf16.mxu0 0
      %526 = vmatpush1.bf16.msra.mxu0 0
      %527 = vmatprep.subr.bf16.mxu0 0
      %528 = vmatpush1.bf16.msra.mxu0 0
      %529 = vmatprep.subr.bf16.mxu0 0
      %530 = vmatpush1.bf16.msra.mxu0 0
      %531 = vmatprep.subr.bf16.mxu0 0
      %532 = vmatpush1.bf16.msra.mxu0 0
      %533 = vmatprep.subr.bf16.mxu0 0
      %534 = vmatpush1.bf16.msra.mxu0 0
      %535 = vmatprep.subr.bf16.mxu0 0
      %536 = vmatpush1.bf16.msra.mxu0 0
      %537 = vmatprep.mubr.bf16.mxu0 0
      %538 = vmatmul.mubr.bf16.gmra.mrb[0].mxu0 %v433
      %v539 = vpop.f32.mrb[0].mxu0
      %v540 = vadd.f32 %v455, %v539
      %v541 = vpop.f32.mrb[0].mxu0
      %v542 = vpop.f32.mrb[0].mxu0
      %v543 = vpop.f32.mrb[0].mxu0
      %544 = vdwg.mxu0
      %545 = vst [vmem:[#allocation9] sm:$0xff] %v540
    $region49: #{tpu_custom_call.1} parent=1 // pred_fallthru
      _
    // Predicated region
    $region50: #{tpu_custom_call.1} parent=1 // pred_check
      _
    $region51: #{tpu_custom_call.1} parent=1 // pred_check_branch
      %547 = sbr.rel (0) target = $region53
    $region52: #{tpu_custom_call.1} parent=1 // pred_region
      %s549 = ssub.s32 128, 128
      %550 = vsyncadd [#allocation5], %s549
      %s552 = sshll.u32 [#allocation9], 4
      %s553 = int_to_ptr.vmem [resolvable:$true] %s552
      %555 = dma.vmem_to_hbm [thread:$0]  %s553, 128, %s7, [#allocation5]
    $region53: #{tpu_custom_call.1} parent=1 // pred_fallthru
      _
    // Predicated region
    $region54: #{tpu_custom_call.1} parent=1 // pred_check
      _
    $region55: #{tpu_custom_call.1} parent=1 // pred_check_branch
      %557 = sbr.rel (0) target = $region57
    $region56: #{tpu_custom_call.1} parent=1 // pred_region
      %558 = dma.done [#allocation5], 128
    $region57: #{tpu_custom_call.1} parent=1 // pred_fallthru
      _
    %559 = vsyncpa [#allocation4], 1
    %560 = vsyncpa [#allocation7], 1
    %561 = vsyncpa [#allocation5], 1

</llo_original>
